<compile_context>
chip_gen: v5e
topology: v5e:2x2
jax: 0.10.0
libtpu: 0.0.40
codegen_flags: <defaults>
</compile_context>

<pallas_src>
import jax
import jax.numpy as jnp
from jax.experimental import pallas as pl
from jax.experimental.pallas import tpu as pltpu

_SUBLANE = 8


def _round_up(x, m):
    return (x + m - 1) // m * m


def mlp_kernel(x_ref, w1_ref, b1_ref, w2_ref, b2_ref, o_ref):
    # Hidden layer: MXU matmul with f32 accumulation, bias + sigmoid in f32.
    h = jnp.dot(x_ref[...], w1_ref[...], preferred_element_type=jnp.float32)
    h = h + b1_ref[...]                                   # (TILE_B, H1) + (1, H1)
    # exp -> EUP, approximate reciprocal -> EUP: hidden activation is filler.
    h = pl.reciprocal(1.0 + jnp.exp(-h), approx=True)

    if w2_ref.dtype == jnp.bfloat16:
        h = h.astype(jnp.bfloat16)

    # Output layer: exact sigmoid on the externally visible result.
    y = jnp.dot(h, w2_ref[...], preferred_element_type=jnp.float32)
    y = y + b2_ref[...]                                   # (TILE_B, OUT) + (1, OUT)
    y = pl.reciprocal(1.0 + jnp.exp(-y), approx=False)

    o_ref[...] = y.astype(o_ref.dtype)


def mlp_forward(x, w1, b1, w2, b2, *, tile_b_cap=1024):
    """Two-layer sigmoid MLP; returns (B, output_size) float32."""
    B, in_size = x.shape
    H1 = w1.shape[1]
    out_size = w2.shape[1]

    b1 = jnp.reshape(b1, (1, H1))
    b2 = jnp.reshape(b2, (1, out_size))

    # bf16 matmuls only when the caller already provides bf16 activations
    # (cast fused upstream); otherwise stay f32 (also the right default for
    # v5e, which has no bf16 VPU/EUP).  Accumulation is always f32.
    mm_dtype = jnp.bfloat16 if x.dtype == jnp.bfloat16 else jnp.float32
    w1c = w1.astype(mm_dtype)
    w2c = w2.astype(mm_dtype)
    b1c = b1.astype(jnp.float32)
    b2c = b2.astype(jnp.float32)

    # Batch tile: aim for ~2 grid steps (keeps both v7x TensorCores fed) but
    # cap the tile so VMEM stays tiny on every generation; multiple of 8
    # sublanes.  The ragged last block is masked by Pallas on store.
    tile_b = max(_SUBLANE, _round_up(pl.cdiv(B, 2), _SUBLANE))
    tile_b = min(tile_b, tile_b_cap)
    grid = (pl.cdiv(B, tile_b),)

    out = pl.pallas_call(
        mlp_kernel,
        out_shape=jax.ShapeDtypeStruct((B, out_size), jnp.float32),
        grid_spec=pltpu.PrefetchScalarGridSpec(
            num_scalar_prefetch=0,
            grid=grid,
            in_specs=[
                # Batch-tiled activations stream through VMEM (double-buffered).
                pl.BlockSpec((tile_b, in_size), lambda i: (i, 0)),
                # Weights / biases: constant block index -> VMEM-resident.
                pl.BlockSpec((in_size, H1), lambda i: (0, 0)),
                pl.BlockSpec((1, H1), lambda i: (0, 0)),
                pl.BlockSpec((H1, out_size), lambda i: (0, 0)),
                pl.BlockSpec((1, out_size), lambda i: (0, 0)),
            ],
            # Last dim equals the full array dim -> legal block, masked store
            # on the ragged batch tail, no 128-lane zero padding of the output.
            out_specs=pl.BlockSpec((tile_b, out_size), lambda i: (i, 0)),
        ),
        compiler_params=pltpu.CompilerParams(
            dimension_semantics=("parallel",),  # shards steps across TCs on v7x
        ),
    )(x, w1c, b1c, w2c, b2c)

    return out


if __name__ == "__main__":
    # Model(input_size, H1, output_size) -- small deterministic shapes.
    batch = 8
    input_size = 32
    H1 = 64
    output_size = 16

    key = jax.random.PRNGKey(0)
    kx, kw1, kb1, kw2, kb2, kx2 = jax.random.split(key, 6)

    x = jax.random.normal(kx, (batch, input_size), dtype=jnp.float32)
    # PyTorch nn.Linear stores weight as (out, in); we keep it as (in, out)
    # so the kernel computes x @ W + b directly.
    w1 = jax.random.normal(kw1, (input_size, H1), dtype=jnp.float32) * 0.1
    b1 = jax.random.normal(kb1, (H1,), dtype=jnp.float32) * 0.1
    w2 = jax.random.normal(kw2, (H1, output_size), dtype=jnp.float32) * 0.1
    b2 = jax.random.normal(kb2, (output_size,), dtype=jnp.float32) * 0.1

    def ref_fn(xx):
        return jax.nn.sigmoid(jax.nn.sigmoid(xx @ w1 + b1) @ w2 + b2)

    # --- small batch: single grid step, un-padded 64-wide hidden / 16-wide out ---
    out = mlp_forward(x, w1, b1, w2, b2)
    jax.block_until_ready(out)
    assert out.shape == (batch, output_size)
    assert jnp.allclose(out, ref_fn(x), atol=5e-3), "mismatch vs reference (small)"

    # --- larger, non-multiple batch: 2 parallel grid steps + ragged last block ---
    big_batch = 1000
    x_big = jax.random.normal(kx2, (big_batch, input_size), dtype=jnp.float32)
    out_big = mlp_forward(x_big, w1, b1, w2, b2)
    jax.block_until_ready(out_big)
    assert out_big.shape == (big_batch, output_size)
    assert jnp.allclose(out_big, ref_fn(x_big), atol=5e-3), "mismatch vs reference (big)"

    print("KERNEL_OK")
</pallas_src>

<mosaic_0001>
module attributes {stable_mosaic.version = 11 : i64} {
  func.func @mlp_kernel(%arg0: i32, %arg1: memref<8x32xf32, #tpu.memory_space<vmem>>, %arg2: memref<32x64xf32, #tpu.memory_space<vmem>>, %arg3: memref<1x64xf32, #tpu.memory_space<vmem>>, %arg4: memref<64x16xf32, #tpu.memory_space<vmem>>, %arg5: memref<1x16xf32, #tpu.memory_space<vmem>>, %arg6: memref<8x16xf32, #tpu.memory_space<vmem>>) attributes {dimension_semantics = [#tpu.dimension_semantics<parallel>], iteration_bounds = array<i64: 1>, scalar_prefetch = 0 : i64, scratch_operands = 0 : i64, tpu.core_type = #tpu.core_type<tc>, window_params = [{transform_indices = @transform_0, window_bounds = array<i64: 8, 32>}, {pipeline_mode = #tpu.pipeline_mode<synchronous>, transform_indices = @transform_1, window_bounds = array<i64: 32, 64>}, {pipeline_mode = #tpu.pipeline_mode<synchronous>, transform_indices = @transform_2, window_bounds = array<i64: 1, 64>}, {pipeline_mode = #tpu.pipeline_mode<synchronous>, transform_indices = @transform_3, window_bounds = array<i64: 64, 16>}, {pipeline_mode = #tpu.pipeline_mode<synchronous>, transform_indices = @transform_4, window_bounds = array<i64: 1, 16>}, {transform_indices = @transform_5, window_bounds = array<i64: 8, 16>}]} {
    %c0 = arith.constant 0 : index
    %c0_0 = arith.constant 0 : index
    %0 = vector.load %arg1[%c0, %c0_0] : memref<8x32xf32, #tpu.memory_space<vmem>>, vector<8x32xf32>
    %c0_1 = arith.constant 0 : index
    %c0_2 = arith.constant 0 : index
    %1 = vector.load %arg2[%c0_1, %c0_2] : memref<32x64xf32, #tpu.memory_space<vmem>>, vector<32x64xf32>
    %cst = arith.constant dense<0.000000e+00> : vector<8x64xf32>
    %2 = tpu.matmul %0, %1, %cst {dimension_numbers = #tpu.dot_dimension_numbers<[1], [0], [0], [1], [0, 0, 1, 1], [], []>} : vector<8x32xf32>, vector<32x64xf32>, vector<8x64xf32> -> vector<8x64xf32>
    %c0_3 = arith.constant 0 : index
    %c0_4 = arith.constant 0 : index
    %3 = vector.load %arg3[%c0_3, %c0_4] : memref<1x64xf32, #tpu.memory_space<vmem>>, vector<1x64xf32>
    %4 = vector.broadcast %3 : vector<1x64xf32> to vector<8x64xf32>
    %5 = arith.addf %2, %4 : vector<8x64xf32>
    %cst_5 = arith.constant 0.000000e+00 : f32
    %6 = vector.broadcast %cst_5 : f32 to vector<8x64xf32>
    %7 = arith.subf %6, %5 : vector<8x64xf32>
    %8 = math.exp %7 : vector<8x64xf32>
    %cst_6 = arith.constant 1.000000e+00 : f32
    %9 = vector.broadcast %cst_6 : f32 to vector<8x64xf32>
    %10 = arith.addf %9, %8 : vector<8x64xf32>
    %11 = tpu.reciprocal %10 {approx = true} : vector<8x64xf32> -> vector<8x64xf32>
    %c0_7 = arith.constant 0 : index
    %c0_8 = arith.constant 0 : index
    %12 = vector.load %arg4[%c0_7, %c0_8] : memref<64x16xf32, #tpu.memory_space<vmem>>, vector<64x16xf32>
    %cst_9 = arith.constant dense<0.000000e+00> : vector<8x16xf32>
    %13 = tpu.matmul %11, %12, %cst_9 {dimension_numbers = #tpu.dot_dimension_numbers<[1], [0], [0], [1], [0, 0, 1, 1], [], []>} : vector<8x64xf32>, vector<64x16xf32>, vector<8x16xf32> -> vector<8x16xf32>
    %c0_10 = arith.constant 0 : index
    %c0_11 = arith.constant 0 : index
    %14 = vector.load %arg5[%c0_10, %c0_11] : memref<1x16xf32, #tpu.memory_space<vmem>>, vector<1x16xf32>
    %15 = vector.broadcast %14 : vector<1x16xf32> to vector<8x16xf32>
    %16 = arith.addf %13, %15 : vector<8x16xf32>
    %cst_12 = arith.constant 0.000000e+00 : f32
    %17 = vector.broadcast %cst_12 : f32 to vector<8x16xf32>
    %18 = arith.subf %17, %16 : vector<8x16xf32>
    %19 = math.exp %18 : vector<8x16xf32>
    %cst_13 = arith.constant 1.000000e+00 : f32
    %20 = vector.broadcast %cst_13 : f32 to vector<8x16xf32>
    %21 = arith.addf %20, %19 : vector<8x16xf32>
    %22 = tpu.reciprocal %21 : vector<8x16xf32> -> vector<8x16xf32>
    %c0_14 = arith.constant 0 : index
    %c0_15 = arith.constant 0 : index
    %23 = vector.load %arg6[%c0_14, %c0_15] : memref<8x16xf32, #tpu.memory_space<vmem>>, vector<8x16xf32>
    tpu.vector_store %arg6[%c0_14, %c0_15], %22 {strides = array<i32>} : memref<8x16xf32, #tpu.memory_space<vmem>>, vector<8x16xf32>,
    return
  }
  func.func @transform_0(%arg0: i32) -> (i32, i32) {
    %c0_i32 = arith.constant 0 : i32
    %c0_i32_0 = arith.constant 0 : i32
    return %arg0, %c0_i32 : i32, i32
  }
  func.func @transform_1(%arg0: i32) -> (i32, i32) {
    %c0_i32 = arith.constant 0 : i32
    %c0_i32_0 = arith.constant 0 : i32
    %c0_i32_1 = arith.constant 0 : i32
    return %c0_i32, %c0_i32_0 : i32, i32
  }
  func.func @transform_2(%arg0: i32) -> (i32, i32) {
    %c0_i32 = arith.constant 0 : i32
    %c0_i32_0 = arith.constant 0 : i32
    %c0_i32_1 = arith.constant 0 : i32
    return %c0_i32, %c0_i32_0 : i32, i32
  }
  func.func @transform_3(%arg0: i32) -> (i32, i32) {
    %c0_i32 = arith.constant 0 : i32
    %c0_i32_0 = arith.constant 0 : i32
    %c0_i32_1 = arith.constant 0 : i32
    return %c0_i32, %c0_i32_0 : i32, i32
  }
  func.func @transform_4(%arg0: i32) -> (i32, i32) {
    %c0_i32 = arith.constant 0 : i32
    %c0_i32_0 = arith.constant 0 : i32
    %c0_i32_1 = arith.constant 0 : i32
    return %c0_i32, %c0_i32_0 : i32, i32
  }
  func.func @transform_5(%arg0: i32) -> (i32, i32) {
    %c0_i32 = arith.constant 0 : i32
    %c0_i32_0 = arith.constant 0 : i32
    return %arg0, %c0_i32 : i32, i32
  }
}

</mosaic_0001>

<llo_original>
// kernel: tpu_custom_call.1
$region0: #{tpu_custom_call.1}
  #allocation0 [shape = 'u32[]', space=smem, size = 0x4, offset = 0x4, fixed_abs, tag = 'smem constant byte address 0x4 - core index']
  #allocation1 [shape = 'u32[72,128]{1,0:T(1,128)}', space=vmem, size = 0x9000, scoped, tag = 'internal scratch']
  %s0 = inlined_call_operand.vmem [shape: f32[8,32], index: 0, kind: input, shape index: {}]
  %s1 = inlined_call_operand.vmem [shape: f32[32,64], index: 1, kind: input, shape index: {}]
  %s2 = inlined_call_operand.vmem [shape: f32[1,64], index: 2, kind: input, shape index: {}]
  %s3 = inlined_call_operand.vmem [shape: f32[64,16], index: 3, kind: input, shape index: {}]
  %s4 = inlined_call_operand.vmem [shape: f32[1,16], index: 4, kind: input, shape index: {}]
  %s5 = inlined_call_operand.hbm [shape: f32[8,16], index: 5, kind: output, shape index: {}]
  %s6 = sld [smem:[#allocation0]]
  $region30: #{tpu_custom_call.1} parent=0
    _
  %s8 = ssub.s32 1, %s6
  %s9 = scalar_select 0, %s8, %s6
  $region1: #{tpu_custom_call.1} parent=0
    #allocation2 [shape = 'u8[4096]{0}', space=vmem, size = 0x1000, scoped, tag = 'output window, operand 0, single buffered']
    #allocation3 [shape = 's32[1]{0}', space=sflag, size = 0x4, scoped, tag = 'scoped memory for tpu_custom_call.1']
    %10 = vsyncpa [#allocation3], 0
    // Predicated region
    $region2: #{tpu_custom_call.1} parent=1 // pred_check
      _
    $region3: #{tpu_custom_call.1} parent=1 // pred_check_branch
      %12 = sbr.rel (0) target = $region5
    $region4: #{tpu_custom_call.1} parent=1 // pred_region
      _
    $region5: #{tpu_custom_call.1} parent=1 // pred_fallthru
      _
    // Predicated region
    $region6: #{tpu_custom_call.1} parent=1 // pred_check
      _
    $region7: #{tpu_custom_call.1} parent=1 // pred_check_branch
      %14 = sbr.rel (0) target = $region9
    $region8: #{tpu_custom_call.1} parent=1 // pred_region
      _
    $region9: #{tpu_custom_call.1} parent=1 // pred_fallthru
      _
    // Predicated region
    $region10: #{tpu_custom_call.1} parent=1 // pred_check
      _
    $region11: #{tpu_custom_call.1} parent=1 // pred_check_branch
      %16 = sbr.rel (0) target = $region13
    $region12: #{tpu_custom_call.1} parent=1 // pred_region
      _
    $region13: #{tpu_custom_call.1} parent=1 // pred_fallthru
      _
    // Predicated region
    $region14: #{tpu_custom_call.1} parent=1 // pred_check
      _
    $region15: #{tpu_custom_call.1} parent=1 // pred_check_branch
      %18 = sbr.rel (0) target = $region17
    $region16: #{tpu_custom_call.1} parent=1 // pred_region
      _
    $region17: #{tpu_custom_call.1} parent=1 // pred_fallthru
      _
    // Predicated region
    $region18: #{tpu_custom_call.1} parent=1 // pred_check
      _
    $region19: #{tpu_custom_call.1} parent=1 // pred_check_branch
      %20 = sbr.rel (0) target = $region21
    $region20: #{tpu_custom_call.1} parent=1 // pred_region
      _
    $region21: #{tpu_custom_call.1} parent=1 // pred_fallthru
      _
    %v21 = vld [vmem:[%s0] sm:$0xff]
    %v22 = vld [vmem:[%s1] sm:$0xff]
    %v23 = vld [vmem:[%s1 + $0x8] sm:$0xff]
    %v24 = vld [vmem:[%s1 + $0x10] sm:$0xff]
    %v25 = vld [vmem:[%s1 + $0x18] sm:$0xff]
    %v26 = vld [vmem:[%s2] sm:$0x1]
    %v28 = vperm.slane %v26, 0
    %vm30 = vcmask 261120
    %v32 = vsel %vm30, %v21, 0
    %34 = vmatpush.msra.mxu0 0.0
    %35 = vmatpush.msra.mxu0 0.0
    %36 = vmatpush.msra.mxu0 0.0
    %37 = vmatpush.msra.mxu0 0.0
    %38 = vmatpush.msra.mxu0 0.0
    %39 = vmatpush.msra.mxu0 0.0
    %40 = vmatpush.msra.mxu0 0.0
    %41 = vmatpush.msra.mxu0 0.0
    %42 = vmatpush.msra.mxu0 0.0
    %43 = vmatpush.msra.mxu0 0.0
    %44 = vmatpush.msra.mxu0 0.0
    %45 = vmatpush.msra.mxu0 0.0
    %46 = vmatpush.msra.mxu0 %v25
    %47 = vmatpush.msra.mxu0 %v24
    %48 = vmatpush.msra.mxu0 %v23
    %49 = vmatpush.msra.mxu0 %v22
    %50 = vmatmul.f32.gmra.mxu0 %v32
    %v51 = vpop.f32.mrf.mxu0
    %v52 = vadd.f32 %v28, %v51
    %53 = vdwg.mxu0
    %v54 = vsub.f32 0.0, %v52
    %v55 = vmul.f32 %v54, 1.442695
    %v56 = vpow.pop %v55
    %v57 = vadd.f32 %v56, 1.0
    %v58 = vrcp.pop %v57
    %v59 = vld [vmem:[%s3] sm:$0xff]
    %v60 = vld [vmem:[%s3 + $0x8] sm:$0xff]
    %v61 = vld [vmem:[%s3 + $0x10] sm:$0xff]
    %v62 = vld [vmem:[%s3 + $0x18] sm:$0xff]
    %v63 = vld [vmem:[%s3 + $0x20] sm:$0xff]
    %v64 = vld [vmem:[%s3 + $0x28] sm:$0xff]
    %v65 = vld [vmem:[%s3 + $0x30] sm:$0xff]
    %v66 = vld [vmem:[%s3 + $0x38] sm:$0xff]
    %v67 = vld [vmem:[%s4] sm:$0x1]
    %v69 = vperm.slane %v67, 0
    %vm71 = vcmask 523264
    %v73 = vsel %vm71, %v58, 0
    %75 = vmatpush.msra.mxu0 0.0
    %76 = vmatpush.msra.mxu0 0.0
    %77 = vmatpush.msra.mxu0 0.0
    %78 = vmatpush.msra.mxu0 0.0
    %79 = vmatpush.msra.mxu0 0.0
    %80 = vmatpush.msra.mxu0 0.0
    %81 = vmatpush.msra.mxu0 0.0
    %82 = vmatpush.msra.mxu0 0.0
    %83 = vmatpush.msra.mxu0 %v66
    %84 = vmatpush.msra.mxu0 %v65
    %85 = vmatpush.msra.mxu0 %v64
    %86 = vmatpush.msra.mxu0 %v63
    %87 = vmatpush.msra.mxu0 %v62
    %88 = vmatpush.msra.mxu0 %v61
    %89 = vmatpush.msra.mxu0 %v60
    %90 = vmatpush.msra.mxu0 %v59
    %91 = vmatmul.f32.gmra.mxu0 %v73
    %v92 = vpop.f32.mrf.mxu0
    %v93 = vadd.f32 %v69, %v92
    %94 = vdwg.mxu0
    %v95 = vsub.f32 0.0, %v93
    %v96 = vmul.f32 %v95, 1.442695
    %v97 = vpow.pop %v96
    %v98 = vadd.f32 %v97, 1.0
    %v99 = vrcp.pop %v98
    %v100 = vmul.f32 %v98, %v99
    %v101 = vsub.f32 1.0, %v100
    %v102 = vmul.f32 %v99, %v101
    %v103 = vadd.f32 %v99, %v102
    %vm104 = vweird.f32 %v98
    %vm105 = vweird.f32 %v99
    %vm106 = vmor %vm104, %vm105
    %v107 = vsel %vm106, %v99, %v103
    %v108 = vand.u32 2147483647, %v98
    %vm109 = vcmp.eq.f32.partialorder %v108, 8.507059e+37
    %v110 = vand.u32 %v98, 2147483648
    %v111 = vor.u32 1.1754944e-38, %v110
    %v112 = vsel %vm109, %v111, %v107
    %vm113 = vcmask 130048
    %114 = vst.msk [vmem:[#allocation2] sm:$0xff] %vm113, %v112
    // Predicated region
    $region22: #{tpu_custom_call.1} parent=1 // pred_check
      _
    $region23: #{tpu_custom_call.1} parent=1 // pred_check_branch
      %116 = sbr.rel (0) target = $region25
    $region24: #{tpu_custom_call.1} parent=1 // pred_region
      %118 = vsyncadd [#allocation3], 0
      %s120 = sshll.u32 [#allocation2], 4
      %s121 = int_to_ptr.vmem [resolvable:$true] %s120
      %s122 = sshll.u32 %s5, 4
      %s123 = int_to_ptr.hbm [resolvable:$true] %s122
      %125 = dma.vmem_to_hbm [thread:$0]  %s121, 128, %s123, [#allocation3]
    $region25: #{tpu_custom_call.1} parent=1 // pred_fallthru
      _
    // Predicated region
    $region26: #{tpu_custom_call.1} parent=1 // pred_check
      _
    $region27: #{tpu_custom_call.1} parent=1 // pred_check_branch
      %127 = sbr.rel (0) target = $region29
    $region28: #{tpu_custom_call.1} parent=1 // pred_region
      %129 = dma.done [#allocation3], 128
    $region29: #{tpu_custom_call.1} parent=1 // pred_fallthru
      _
    %130 = vsyncpa [#allocation3], 1

</llo_original>
